<compile_context>
chip_gen: v7x
topology: tpu7x:2x2x1
jax: 0.10.0
libtpu: 0.0.40
codegen_flags: <defaults>
</compile_context>

<pallas_src>
import functools

import jax
import jax.numpy as jnp
from jax import lax
from jax.experimental import pallas as pl
from jax.experimental.pallas import tpu as pltpu


def head_kernel(x_ref, wqkv_ref, o_ref, *, compute_dtype):
    # x_ref: (Bb, T, C)   wqkv_ref: (C, 3H) ordered [q | k | v]   o_ref: (Bb, T, H)
    Bb, T, C = x_ref.shape
    H = o_ref.shape[-1]

    # --- fused QKV projection: one MXU pass with N = 3H -------------------------
    # Operands cast to compute_dtype (bf16 by default -> fast MXU path), f32 accum.
    x2d = x_ref[...].reshape(Bb * T, C).astype(compute_dtype)
    w = wqkv_ref[...].astype(compute_dtype)
    qkv = jnp.dot(x2d, w, preferred_element_type=jnp.float32)    # (Bb*T, 3H) f32
    qkv = qkv.reshape(Bb, T, 3 * H)

    scale = C ** (-0.5)  # module scales by n_embd**-0.5 (intentional, do not "fix")
    q = (qkv[:, :, 0:H] * scale).astype(compute_dtype)           # scale on (T,H), not (T,T)
    k = qkv[:, :, H:2 * H].astype(compute_dtype)
    v = qkv[:, :, 2 * H:3 * H].astype(compute_dtype)
    # TODO(synk): bundle/MLIR-check the k slice (lane offset 64, width 64) for lane
    #             relayout cost; if visible, issue three N=64 projections or fuse heads.

    # --- scores: batched q @ k^T as an NT matmul (no explicit transpose) --------
    wei = lax.dot_general(
        q, k, (((2,), (2,)), ((0,), (0,))),
        preferred_element_type=jnp.float32)                      # (Bb, T, T) f32

    # causal (lower-triangular) mask; diagonal always unmasked -> row max finite
    row = lax.broadcasted_iota(jnp.int32, (T, T), 0)
    col = lax.broadcasted_iota(jnp.int32, (T, T), 1)
    wei = jnp.where((col <= row)[None, :, :], wei, -jnp.inf)

    # --- softmax with deferred normalization (all stats in f32) -----------------
    wei = wei - jnp.max(wei, axis=-1, keepdims=True)
    p = jnp.exp(wei)                                             # f32 EUP (v5e-safe)
    denom = jnp.sum(p, axis=-1, keepdims=True)                   # (Bb, T, 1) f32

    out = lax.dot_general(
        p.astype(compute_dtype), v, (((2,), (1,)), ((0,), (0,))),
        preferred_element_type=jnp.float32)                      # (Bb, T, H) f32
    out = out * pl.reciprocal(denom, approx=True)                # EUP slot, off the VALU
    o_ref[...] = out.astype(o_ref.dtype)


def _round_up(n, m):
    return (n + m - 1) // m * m


def _vmem_bytes_estimate(bb, T, C, H):
    """Per-step VMEM working set estimate (f32 + bf16 temporaries, lane-padded)."""
    l3h = _round_up(3 * H, 128)   # qkv result width after lane padding (192 -> 256)
    lh = _round_up(H, 128)        # per-head width after lane padding (64 -> 128)
    f32 = 4 * (
        2 * bb * T * C            # x block, double-buffered by the pipeline
        + bb * T * l3h            # fused qkv projection result
        + 3 * bb * T * lh         # q / k / v slices
        + 2 * bb * T * T          # scores + unnormalized probs
        + 2 * bb * T * lh         # output block, double-buffered
        + 2 * T * T               # iota / mask temporaries
    )
    bf16 = 2 * (bb * T * C + 3 * bb * T * lh + bb * T * T)  # cast copies of matmul operands
    fixed = 4 * 2 * C * l3h + 2 * C * l3h                   # weight block (x2) + bf16 copy
    return int(1.5 * (f32 + bf16)) + fixed                  # 1.5x margin for compiler temps


def _pick_batch_block(B, T, C, H, *, budget_bytes=20 << 20, target_grid=4, min_grid=2):
    """Largest batch block that fits VMEM *and* leaves >= target_grid (else >= min_grid)
    grid steps, so the pipeline overlaps DMA with compute and v7x can use both cores."""
    divisors = [d for d in range(1, B + 1) if B % d == 0]
    fitting = [d for d in divisors if _vmem_bytes_estimate(d, T, C, H) <= budget_bytes]
    if not fitting:
        return 1
    for need in (target_grid, min_grid, 1):
        cands = [d for d in fitting if B // d >= need]
        if cands:
            return max(cands)
    return max(fitting)


def fuse_head_weights(wq, wk, wv):
    """Fuse projection weights once at parameter-setup time (not per forward call)."""
    return jnp.concatenate([wq, wk, wv], axis=1)  # (C, 3H), ordered [q | k | v]


def head_forward(x, w_qkv, *, compute_dtype=jnp.bfloat16):
    B, T, C = x.shape
    assert w_qkv.shape[0] == C and w_qkv.shape[1] % 3 == 0
    H = w_qkv.shape[1] // 3

    bb = _pick_batch_block(B, T, C, H)
    grid = (B // bb,)

    kernel = functools.partial(head_kernel, compute_dtype=compute_dtype)
    return pl.pallas_call(
        kernel,
        out_shape=jax.ShapeDtypeStruct((B, T, H), x.dtype),
        grid=grid,
        in_specs=[
            pl.BlockSpec((bb, T, C), lambda b: (b, 0, 0)),
            # Constant block index: fetched once, buffer reused across grid steps.
            pl.BlockSpec((C, 3 * H), lambda b: (0, 0)),
        ],
        out_specs=pl.BlockSpec((bb, T, H), lambda b: (b, 0, 0)),
        compiler_params=pltpu.CompilerParams(
            dimension_semantics=("parallel",),
            # 32 MiB is within scoped/physical limits on v5e/v6e/v7x; the block picker
            # keeps the (margin-inflated) working set well below this.
            vmem_limit_bytes=32 << 20,
        ),
    )(x, w_qkv)


def head_ref(x, wk, wq, wv):
    """Pure-JAX reference mirroring the PyTorch forward (eval mode, f32)."""
    B, T, C = x.shape
    k = x @ wk
    q = x @ wq
    v = x @ wv
    wei = (q @ jnp.swapaxes(k, -2, -1)) * (C ** -0.5)
    mask = jnp.tril(jnp.ones((T, T), dtype=bool))
    wei = jnp.where(mask, wei, -jnp.inf)
    wei = jax.nn.softmax(wei, axis=-1)
    return wei @ v


if __name__ == "__main__":
    # Small, deterministic shapes consistent with the module:
    # n_embd is fixed at 256 by the module; T <= block_size (256).
    B, T = 4, 128
    n_embd = 256       # C
    head_size = 64     # H

    key = jax.random.PRNGKey(0)
    kx, kk, kq, kv = jax.random.split(key, 4)

    x = jax.random.normal(kx, (B, T, n_embd), dtype=jnp.float32)

    # nn.Linear default init: U(-1/sqrt(in_features), 1/sqrt(in_features)); weights
    # stored as (C, head_size) so the kernel computes x @ W directly.
    bound = 1.0 / (n_embd ** 0.5)
    wk = jax.random.uniform(kk, (n_embd, head_size), jnp.float32, -bound, bound)
    wq = jax.random.uniform(kq, (n_embd, head_size), jnp.float32, -bound, bound)
    wv = jax.random.uniform(kv, (n_embd, head_size), jnp.float32, -bound, bound)

    w_qkv = fuse_head_weights(wq, wk, wv)   # done once, outside the forward pass
    ref = head_ref(x, wk, wq, wv)

    # Fast path: bf16 MXU operands, f32 softmax stats / accumulation.
    out = head_forward(x, w_qkv)
    jax.block_until_ready(out)
    assert out.shape == (B, T, head_size)
    # Tolerance accounts for bf16 operand rounding across three chained matmuls plus
    # the approximate EUP reciprocal; softmax statistics themselves stay f32.
    assert jnp.allclose(out, ref, atol=5e-2, rtol=5e-2), "bf16 path mismatch vs reference"

    # Exact-precision path: f32 matmul operands, tight tolerance (approx reciprocal only).
    out_f32 = head_forward(x, w_qkv, compute_dtype=jnp.float32)
    jax.block_until_ready(out_f32)
    assert jnp.allclose(out_f32, ref, atol=2e-3, rtol=2e-3), "f32 path mismatch vs reference"

    print("KERNEL_OK")
</pallas_src>

<mosaic_0001>
module attributes {stable_mosaic.version = 11 : i64} {
  func.func @head_kernel(%arg0: i32, %arg1: memref<1x128x256xf32, #tpu.memory_space<vmem>>, %arg2: memref<256x192xf32, #tpu.memory_space<vmem>>, %arg3: memref<1x128x64xf32, #tpu.memory_space<vmem>>) attributes {dimension_semantics = [#tpu.dimension_semantics<parallel>], iteration_bounds = array<i64: 4>, scalar_prefetch = 0 : i64, scratch_operands = 0 : i64, tpu.core_type = #tpu.core_type<tc>, window_params = [{transform_indices = @transform_0, window_bounds = array<i64: 1, 128, 256>}, {pipeline_mode = #tpu.pipeline_mode<synchronous>, transform_indices = @transform_1, window_bounds = array<i64: 256, 192>}, {transform_indices = @transform_2, window_bounds = array<i64: 1, 128, 64>}]} {
    %c0 = arith.constant 0 : index
    %c0_0 = arith.constant 0 : index
    %c0_1 = arith.constant 0 : index
    %0 = vector.load %arg1[%c0, %c0_0, %c0_1] : memref<1x128x256xf32, #tpu.memory_space<vmem>>, vector<1x128x256xf32>
    %1 = vector.shape_cast %0 : vector<1x128x256xf32> to vector<128x256xf32>
    %2 = arith.truncf %1 : vector<128x256xf32> to vector<128x256xbf16>
    %c0_2 = arith.constant 0 : index
    %c0_3 = arith.constant 0 : index
    %3 = vector.load %arg2[%c0_2, %c0_3] : memref<256x192xf32, #tpu.memory_space<vmem>>, vector<256x192xf32>
    %4 = arith.truncf %3 : vector<256x192xf32> to vector<256x192xbf16>
    %cst = arith.constant dense<0.000000e+00> : vector<128x192xf32>
    %5 = tpu.matmul %2, %4, %cst {dimension_numbers = #tpu.dot_dimension_numbers<[1], [0], [0], [1], [0, 0, 1, 1], [], []>} : vector<128x256xbf16>, vector<256x192xbf16>, vector<128x192xf32> -> vector<128x192xf32>
    %6 = vector.shape_cast %5 : vector<128x192xf32> to vector<1x128x192xf32>
    %7 = vector.extract_strided_slice %6 {offsets = [0, 0, 0], sizes = [1, 128, 64], strides = [1, 1, 1]} : vector<1x128x192xf32> to vector<1x128x64xf32>
    %cst_4 = arith.constant 6.250000e-02 : f32
    %8 = vector.broadcast %cst_4 : f32 to vector<1x128x64xf32>
    %9 = arith.mulf %7, %8 : vector<1x128x64xf32>
    %10 = arith.truncf %9 : vector<1x128x64xf32> to vector<1x128x64xbf16>
    %11 = vector.extract_strided_slice %6 {offsets = [0, 0, 64], sizes = [1, 128, 64], strides = [1, 1, 1]} : vector<1x128x192xf32> to vector<1x128x64xf32>
    %12 = arith.truncf %11 : vector<1x128x64xf32> to vector<1x128x64xbf16>
    %13 = vector.extract_strided_slice %6 {offsets = [0, 0, 128], sizes = [1, 128, 64], strides = [1, 1, 1]} : vector<1x128x192xf32> to vector<1x128x64xf32>
    %14 = arith.truncf %13 : vector<1x128x64xf32> to vector<1x128x64xbf16>
    %cst_5 = arith.constant dense<0.000000e+00> : vector<1x128x128xf32>
    %15 = tpu.matmul %10, %12, %cst_5 {dimension_numbers = #tpu.dot_dimension_numbers<[2], [2], [1], [1], [0, 0, 0, 1, 1, 1], [0], [0]>} : vector<1x128x64xbf16>, vector<1x128x64xbf16>, vector<1x128x128xf32> -> vector<1x128x128xf32>
    %16 = tpu.iota {dimensions = array<i32: 0>} : vector<128x128xi32>
    %17 = tpu.iota {dimensions = array<i32: 1>} : vector<128x128xi32>
    %18 = arith.cmpi sle, %17, %16 : vector<128x128xi32>
    %19 = vector.shape_cast %18 : vector<128x128xi1> to vector<1x128x128xi1>
    %cst_6 = arith.constant 0xFF800000 : f32
    %20 = vector.broadcast %cst_6 : f32 to vector<1x128x128xf32>
    %21 = arith.select %19, %15, %20 : vector<1x128x128xi1>, vector<1x128x128xf32>
    %cst_7 = arith.constant dense<0xFF800000> : vector<1x128xf32>
    %22 = vector.multi_reduction <maximumf>, %21, %cst_7 [2] : vector<1x128x128xf32> to vector<1x128xf32>
    %23 = vector.shape_cast %22 : vector<1x128xf32> to vector<1x128x1xf32>
    %24 = vector.broadcast %23 : vector<1x128x1xf32> to vector<1x128x128xf32>
    %25 = arith.subf %21, %24 : vector<1x128x128xf32>
    %26 = math.exp %25 : vector<1x128x128xf32>
    %cst_8 = arith.constant dense<0.000000e+00> : vector<1x128xf32>
    %27 = vector.multi_reduction <add>, %26, %cst_8 [2] : vector<1x128x128xf32> to vector<1x128xf32>
    %28 = vector.shape_cast %27 : vector<1x128xf32> to vector<1x128x1xf32>
    %29 = arith.truncf %26 : vector<1x128x128xf32> to vector<1x128x128xbf16>
    %cst_9 = arith.constant dense<0.000000e+00> : vector<1x128x64xf32>
    %30 = tpu.matmul %29, %14, %cst_9 {dimension_numbers = #tpu.dot_dimension_numbers<[2], [1], [1], [2], [0, 0, 0, 1, 1, 2], [0], [0]>} : vector<1x128x128xbf16>, vector<1x128x64xbf16>, vector<1x128x64xf32> -> vector<1x128x64xf32>
    %31 = tpu.reciprocal %28 {approx = true} : vector<1x128x1xf32> -> vector<1x128x1xf32>
    %32 = vector.broadcast %31 : vector<1x128x1xf32> to vector<1x128x64xf32>
    %33 = arith.mulf %30, %32 : vector<1x128x64xf32>
    %c0_10 = arith.constant 0 : index
    %c0_11 = arith.constant 0 : index
    %c0_12 = arith.constant 0 : index
    %34 = vector.load %arg3[%c0_10, %c0_11, %c0_12] : memref<1x128x64xf32, #tpu.memory_space<vmem>>, vector<1x128x64xf32>
    tpu.vector_store %arg3[%c0_10, %c0_11, %c0_12], %33 {strides = array<i32>} : memref<1x128x64xf32, #tpu.memory_space<vmem>>, vector<1x128x64xf32>,
    return
  }
  func.func @transform_0(%arg0: i32) -> (i32, i32, i32) {
    %c0_i32 = arith.constant 0 : i32
    %c0_i32_0 = arith.constant 0 : i32
    %c0_i32_1 = arith.constant 0 : i32
    return %arg0, %c0_i32, %c0_i32_0 : i32, i32, i32
  }
  func.func @transform_1(%arg0: i32) -> (i32, i32) {
    %c0_i32 = arith.constant 0 : i32
    %c0_i32_0 = arith.constant 0 : i32
    %c0_i32_1 = arith.constant 0 : i32
    return %c0_i32, %c0_i32_0 : i32, i32
  }
  func.func @transform_2(%arg0: i32) -> (i32, i32, i32) {
    %c0_i32 = arith.constant 0 : i32
    %c0_i32_0 = arith.constant 0 : i32
    %c0_i32_1 = arith.constant 0 : i32
    return %arg0, %c0_i32, %c0_i32_0 : i32, i32, i32
  }
}

</mosaic_0001>

<llo_original>
// kernel: tpu_custom_call.1
$region0: #{tpu_custom_call.1}
  #allocation0 [shape = 'u32[]', space=smem, size = 0x4, offset = 0x4, fixed_abs, tag = 'smem constant byte address 0x4 - core index']
  #allocation1 [shape = 'u32[144,128]{1,0:T(1,128)}', space=vmem, size = 0x12000, scoped, tag = 'internal scratch']
  %s0 = inlined_call_operand.hbm [shape: f32[4,128,256], index: 0, kind: input, shape index: {}]
  %s1 = inlined_call_operand.vmem [shape: f32[256,192], index: 1, kind: input, shape index: {}]
  %s2 = inlined_call_operand.vmem [shape: f32[4,128,64], index: 2, kind: output, shape index: {}]
  %s3 = sld [smem:[#allocation0]]
  $region45: #{tpu_custom_call.1} parent=0
    _
  %s5 = ssub.s32 1, %s3
  %s6 = scalar_select 0, %s5, %s3
  $region1: #{tpu_custom_call.1} parent=0
    #allocation2 [shape = 'u8[262144]{0}', space=vmem, size = 0x40000, scoped, tag = 'input window, operand 0']
    #allocation3 [shape = 's32[2]{0}', space=sflag, size = 0x8, scoped, tag = 'scoped memory for tpu_custom_call.1']
    %7 = vsyncpa [#allocation3], 0
    %s8 = scalar_lea.sflag [#allocation3], 1
    %9 = vsyncpa %s8, 0
    loop: start=0, step=1, limit=6
    $region2: #{tpu_custom_call.1} parent=1 // loop_pre_header
      _
    $region3: #{tpu_custom_call.1} parent=1 // loop_header
      %s11 = sphi 0, %s15
      %p12 = scmp.ge.s32.totalorder %s11, 6
      %s21 = sphi 0, %s23
      %s24 = sphi 0, %s21
      %s25 = sphi 0, %s24
      %s41 = sphi 0, %s25
      %s45 = sphi 0, %s45
      %s47 = sphi 0, %s45
      %s48 = sphi 0, %s47
      %s62 = sphi 0, %s48
      %s68 = sphi 0, %s70
      %s71 = sphi 0, %s68
      %s72 = sphi 0, %s71
      %s88 = sphi 0, %s72
    $region4: #{tpu_custom_call.1} parent=1 // loop_header_branch
      %14 = sbr.rel (%p12) target = $region8
    $region5: #{tpu_custom_call.1} parent=1 // loop_body
      %s16 = ssub.s32 %s11, 1
      %s17 = ssub.s32 %s11, 2
      %s18 = sadd.s32 %s11, 1
      %s19 = ssub.s32 %s11, %s18
      %p20 = scmp.eq.s32.totalorder %s19, 0
      %s22 = sadd.s32 %s21, 1
      %s23 = scalar_select %p20, %s21, %s22
      %p26 = pneg %p20
      %p27 = scmp.eq.s32.totalorder %s11, 3
      %p28 = por %p26, %p27
      %p29 = scmp.ne.s32.totalorder %s21, %s24
      %p30 = scmp.eq.s32.totalorder %s11, 0
      %p31 = por %p29, %p30
      %p32 = scmp.ne.s32.totalorder %s21, %s24
      %p33 = scmp.eq.s32.totalorder %s16, 3
      %p34 = por %p32, %p33
      %p35 = scmp.ne.s32.totalorder %s24, %s25
      %p36 = scmp.eq.s32.totalorder %s16, 0
      %p37 = por %p35, %p36
      %p38 = scmp.ne.s32.totalorder %s24, %s25
      %p39 = scmp.eq.s32.totalorder %s17, 3
      %p40 = por %p38, %p39
      %p42 = scmp.ne.s32.totalorder %s25, %s41
      %p43 = scmp.eq.s32.totalorder %s17, 0
      %p44 = por %p42, %p43
      %s46 = sadd.s32 %s45, 1
      %p49 = scmp.eq.s32.totalorder %s11, 3
      %p50 = scmp.ne.s32.totalorder %s45, %s47
      %p51 = scmp.eq.s32.totalorder %s11, 0
      %p52 = por %p50, %p51
      %p53 = scmp.ne.s32.totalorder %s45, %s47
      %p54 = scmp.eq.s32.totalorder %s16, 3
      %p55 = por %p53, %p54
      %p56 = scmp.ne.s32.totalorder %s47, %s48
      %p57 = scmp.eq.s32.totalorder %s16, 0
      %p58 = por %p56, %p57
      %p59 = scmp.ne.s32.totalorder %s47, %s48
      %p60 = scmp.eq.s32.totalorder %s17, 3
      %p61 = por %p59, %p60
      %p63 = scmp.ne.s32.totalorder %s48, %s62
      %p64 = scmp.eq.s32.totalorder %s17, 0
      %p65 = por %p63, %p64
      %s66 = ssub.s32 %s11, %s18
      %p67 = scmp.eq.s32.totalorder %s66, 0
      %s69 = sadd.s32 %s68, 1
      %s70 = scalar_select %p67, %s68, %s69
      %p73 = pneg %p67
      %p74 = scmp.eq.s32.totalorder %s11, 3
      %p75 = por %p73, %p74
      %p76 = scmp.ne.s32.totalorder %s68, %s71
      %p77 = scmp.eq.s32.totalorder %s11, 0
      %p78 = por %p76, %p77
      %p79 = scmp.ne.s32.totalorder %s68, %s71
      %p80 = scmp.eq.s32.totalorder %s16, 3
      %p81 = por %p79, %p80
      %p82 = scmp.ne.s32.totalorder %s71, %s72
      %p83 = scmp.eq.s32.totalorder %s16, 0
      %p84 = por %p82, %p83
      %p85 = scmp.ne.s32.totalorder %s71, %s72
      %p86 = scmp.eq.s32.totalorder %s17, 3
      %p87 = por %p85, %p86
      %p89 = scmp.ne.s32.totalorder %s72, %s88
      %p90 = scmp.eq.s32.totalorder %s17, 0
      %p91 = por %p89, %p90
      %p92 = scmp.le.s32.totalorder 1, %s11
      %p93 = scmp.lt.s32.totalorder %s11, 5
      %p94 = pnand %p92, %p93
      %p95 = pneg %p94
      // Predicated region
      $region9: #{tpu_custom_call.1} parent=5 // pred_check
        _
      $region10: #{tpu_custom_call.1} parent=5 // pred_check_branch
        %97 = sbr.rel (%p94) target = $region12
      $region11: #{tpu_custom_call.1} parent=5 // pred_region
        %s98 = ssub.s32 %s11, 1
        // Predicated region
        $region13: #{tpu_custom_call.1} parent=11 // pred_check
          %p99 = pneg %p58
        $region14: #{tpu_custom_call.1} parent=11 // pred_check_branch
          %101 = sbr.rel (%p99) target = $region16
        $region15: #{tpu_custom_call.1} parent=11 // pred_region
          _
        $region16: #{tpu_custom_call.1} parent=11 // pred_fallthru
          _
      $region12: #{tpu_custom_call.1} parent=5 // pred_fallthru
        _
      %p102 = scmp.lt.s32.totalorder %s11, 4
      // Predicated region
      $region17: #{tpu_custom_call.1} parent=5 // pred_check
        %p103 = pneg %p102
      $region18: #{tpu_custom_call.1} parent=5 // pred_check_branch
        %105 = sbr.rel (%p103) target = $region20
      $region19: #{tpu_custom_call.1} parent=5 // pred_region
        // Predicated region
        $region21: #{tpu_custom_call.1} parent=19 // pred_check
          %p106 = pneg %p31
        $region22: #{tpu_custom_call.1} parent=19 // pred_check_branch
          %108 = sbr.rel (%p106) target = $region24
        $region23: #{tpu_custom_call.1} parent=19 // pred_region
          %s109 = sand.u32 %s21, 1
          %s110 = scalar_lea.sflag [#allocation3], %s109
          %s111 = sand.u32 %s21, 1
          %s112 = smul.addr %s111, 256
          %s113 = scalar_lea.vmem [#allocation2], %s112
          %s115 = ssub.s32 4096, 4096
          %116 = vsyncadd %s110, %s115
          %s117 = smul.addr %s11, 32
          %s118 = smul.addr %s117, 128
          %s119 = scalar_lea.hbm %s0, %s118
          %s120 = sshll.u32 %s113, 4
          %s121 = int_to_ptr.vmem [resolvable:$true] %s120
          %126 = dma.hbm_to_vmem [thread:$0]  %s119, 4096, %s121, %s110, 256, 256, 16
        $region24: #{tpu_custom_call.1} parent=19 // pred_fallthru
          _
      $region20: #{tpu_custom_call.1} parent=5 // pred_fallthru
        _
      %p127 = scmp.le.s32.totalorder 1, %s11
      %p128 = scmp.lt.s32.totalorder %s11, 5
      %p129 = pnand %p127, %p128
      %p130 = pneg %p129
      // Predicated region
      $region25: #{tpu_custom_call.1} parent=5 // pred_check
        _
      $region26: #{tpu_custom_call.1} parent=5 // pred_check_branch
        %132 = sbr.rel (%p129) target = $region28
      $region27: #{tpu_custom_call.1} parent=5 // pred_region
        %s133 = ssub.s32 %s11, 1
        %s134 = sand.u32 %s24, 1
        %s135 = scalar_lea.sflag [#allocation3], %s134
        %s136 = sand.u32 %s24, 1
        %s137 = smul.addr %s136, 256
        %s138 = scalar_lea.vmem [#allocation2], %s137
        // Predicated region
        $region29: #{tpu_custom_call.1} parent=27 // pred_check
          %p139 = pneg %p37
        $region30: #{tpu_custom_call.1} parent=27 // pred_check_branch
          %141 = sbr.rel (%p139) target = $region32
        $region31: #{tpu_custom_call.1} parent=27 // pred_region
          %142 = dma.done %s135, 4096
        $region32: #{tpu_custom_call.1} parent=27 // pred_fallthru
          _
        %s143 = sand.u32 %s24, 1
        %s144 = scalar_lea.sflag [#allocation3], %s143
        %s145 = sand.u32 %s24, 1
        %s146 = smul.addr %s145, 256
        %s147 = scalar_lea.vmem [#allocation2], %s146
        %p148 = pneg %p37
        %p149 = pneg %p34
        %p150 = pneg %p58
        %p151 = pneg %p55
        %p152 = pneg %p84
        %p153 = pneg %p81
        %p154 = scmp.lt.s32.totalorder %s16, 3
        %s155 = scalar_select %p154, %s16, 3
        %s156 = smul.addr %s155, 16
        %s157 = smul.addr %s156, 8
        %s158 = scalar_lea.vmem %s2, %s157
        %p159 = scmp.lt.s32.totalorder %s16, 3
        %s160 = scalar_select %p159, %s16, 3
        %s161 = smul.addr %s160, 16
        %s162 = smul.addr %s161, 8
        %s163 = scalar_lea.vmem %s2, %s162
        %v165 = vld [vmem:[%s138] sm:$0xff]
        %v166 = vld [vmem:[%s138 + $0x8] sm:$0xff]
        %v167 = vld [vmem:[%s138 + $0x10] sm:$0xff]
        %v168 = vld [vmem:[%s138 + $0x18] sm:$0xff]
        %v169 = vld [vmem:[%s138 + $0x20] sm:$0xff]
        %v170 = vld [vmem:[%s138 + $0x28] sm:$0xff]
        %v171 = vld [vmem:[%s138 + $0x30] sm:$0xff]
        %v172 = vld [vmem:[%s138 + $0x38] sm:$0xff]
        %v173 = vld [vmem:[%s138 + $0x40] sm:$0xff]
        %v174 = vld [vmem:[%s138 + $0x48] sm:$0xff]
        %v175 = vld [vmem:[%s138 + $0x50] sm:$0xff]
        %v176 = vld [vmem:[%s138 + $0x58] sm:$0xff]
        %v177 = vld [vmem:[%s138 + $0x60] sm:$0xff]
        %v178 = vld [vmem:[%s138 + $0x68] sm:$0xff]
        %v179 = vld [vmem:[%s138 + $0x70] sm:$0xff]
        %v180 = vld [vmem:[%s138 + $0x78] sm:$0xff]
        %v181 = vld [vmem:[%s138 + $0x80] sm:$0xff]
        %v182 = vld [vmem:[%s138 + $0x88] sm:$0xff]
        %v183 = vld [vmem:[%s138 + $0x90] sm:$0xff]
        %v184 = vld [vmem:[%s138 + $0x98] sm:$0xff]
        %v185 = vld [vmem:[%s138 + $0xa0] sm:$0xff]
        %v186 = vld [vmem:[%s138 + $0xa8] sm:$0xff]
        %v187 = vld [vmem:[%s138 + $0xb0] sm:$0xff]
        %v188 = vld [vmem:[%s138 + $0xb8] sm:$0xff]
        %v189 = vld [vmem:[%s138 + $0xc0] sm:$0xff]
        %v190 = vld [vmem:[%s138 + $0xc8] sm:$0xff]
        %v191 = vld [vmem:[%s138 + $0xd0] sm:$0xff]
        %v192 = vld [vmem:[%s138 + $0xd8] sm:$0xff]
        %v193 = vld [vmem:[%s138 + $0xe0] sm:$0xff]
        %v194 = vld [vmem:[%s138 + $0xe8] sm:$0xff]
        %v195 = vld [vmem:[%s138 + $0xf0] sm:$0xff]
        %v196 = vld [vmem:[%s138 + $0xf8] sm:$0xff]
        %v197 = vpack.c.bf16 %v167, %v165
        %v198 = vpack.c.bf16 %v168, %v166
        %v199 = vpack.c.bf16 %v171, %v169
        %v200 = vpack.c.bf16 %v172, %v170
        %v201 = vpack.c.bf16 %v175, %v173
        %v202 = vpack.c.bf16 %v176, %v174
        %v203 = vpack.c.bf16 %v179, %v177
        %v204 = vpack.c.bf16 %v180, %v178
        %v205 = vpack.c.bf16 %v183, %v181
        %v206 = vpack.c.bf16 %v184, %v182
        %v207 = vpack.c.bf16 %v187, %v185
        %v208 = vpack.c.bf16 %v188, %v186
        %v209 = vpack.c.bf16 %v191, %v189
        %v210 = vpack.c.bf16 %v192, %v190
        %v211 = vpack.c.bf16 %v195, %v193
        %v212 = vpack.c.bf16 %v196, %v194
        %v213 = vld [vmem:[%s1] sm:$0xff]
        %v214 = vld [vmem:[%s1 + $0x8] sm:$0xff]
        %v215 = vld [vmem:[%s1 + $0x10] sm:$0xff]
        %v216 = vld [vmem:[%s1 + $0x18] sm:$0xff]
        %v217 = vld [vmem:[%s1 + $0x20] sm:$0xff]
        %v218 = vld [vmem:[%s1 + $0x28] sm:$0xff]
        %v219 = vld [vmem:[%s1 + $0x30] sm:$0xff]
        %v220 = vld [vmem:[%s1 + $0x38] sm:$0xff]
        %v221 = vld [vmem:[%s1 + $0x40] sm:$0xff]
        %v222 = vld [vmem:[%s1 + $0x48] sm:$0xff]
        %v223 = vld [vmem:[%s1 + $0x50] sm:$0xff]
        %v224 = vld [vmem:[%s1 + $0x58] sm:$0xff]
        %v225 = vld [vmem:[%s1 + $0x60] sm:$0xff]
        %v226 = vld [vmem:[%s1 + $0x68] sm:$0xff]
        %v227 = vld [vmem:[%s1 + $0x70] sm:$0xff]
        %v228 = vld [vmem:[%s1 + $0x78] sm:$0xff]
        %v229 = vld [vmem:[%s1 + $0x80] sm:$0xff]
        %v230 = vld [vmem:[%s1 + $0x88] sm:$0xff]
        %v231 = vld [vmem:[%s1 + $0x90] sm:$0xff]
        %v232 = vld [vmem:[%s1 + $0x98] sm:$0xff]
        %v233 = vld [vmem:[%s1 + $0xa0] sm:$0xff]
        %v234 = vld [vmem:[%s1 + $0xa8] sm:$0xff]
        %v235 = vld [vmem:[%s1 + $0xb0] sm:$0xff]
        %v236 = vld [vmem:[%s1 + $0xb8] sm:$0xff]
        %v237 = vld [vmem:[%s1 + $0xc0] sm:$0xff]
        %v238 = vld [vmem:[%s1 + $0xc8] sm:$0xff]
        %v239 = vld [vmem:[%s1 + $0xd0] sm:$0xff]
        %v240 = vld [vmem:[%s1 + $0xd8] sm:$0xff]
        %v241 = vld [vmem:[%s1 + $0xe0] sm:$0xff]
        %v242 = vld [vmem:[%s1 + $0xe8] sm:$0xff]
        %v243 = vld [vmem:[%s1 + $0xf0] sm:$0xff]
        %v244 = vld [vmem:[%s1 + $0xf8] sm:$0xff]
        %v245 = vld [vmem:[%s1 + $0x100] sm:$0xff]
        %v246 = vld [vmem:[%s1 + $0x108] sm:$0xff]
        %v247 = vld [vmem:[%s1 + $0x110] sm:$0xff]
        %v248 = vld [vmem:[%s1 + $0x118] sm:$0xff]
        %v249 = vld [vmem:[%s1 + $0x120] sm:$0xff]
        %v250 = vld [vmem:[%s1 + $0x128] sm:$0xff]
        %v251 = vld [vmem:[%s1 + $0x130] sm:$0xff]
        %v252 = vld [vmem:[%s1 + $0x138] sm:$0xff]
        %v253 = vld [vmem:[%s1 + $0x140] sm:$0xff]
        %v254 = vld [vmem:[%s1 + $0x148] sm:$0xff]
        %v255 = vld [vmem:[%s1 + $0x150] sm:$0xff]
        %v256 = vld [vmem:[%s1 + $0x158] sm:$0xff]
        %v257 = vld [vmem:[%s1 + $0x160] sm:$0xff]
        %v258 = vld [vmem:[%s1 + $0x168] sm:$0xff]
        %v259 = vld [vmem:[%s1 + $0x170] sm:$0xff]
        %v260 = vld [vmem:[%s1 + $0x178] sm:$0xff]
        %v261 = vld [vmem:[%s1 + $0x180] sm:$0xff]
        %v262 = vld [vmem:[%s1 + $0x188] sm:$0xff]
        %v263 = vld [vmem:[%s1 + $0x190] sm:$0xff]
        %v264 = vld [vmem:[%s1 + $0x198] sm:$0xff]
        %v265 = vld [vmem:[%s1 + $0x1a0] sm:$0xff]
        %v266 = vld [vmem:[%s1 + $0x1a8] sm:$0xff]
        %v267 = vld [vmem:[%s1 + $0x1b0] sm:$0xff]
        %v268 = vld [vmem:[%s1 + $0x1b8] sm:$0xff]
        %v269 = vld [vmem:[%s1 + $0x1c0] sm:$0xff]
        %v270 = vld [vmem:[%s1 + $0x1c8] sm:$0xff]
        %v271 = vld [vmem:[%s1 + $0x1d0] sm:$0xff]
        %v272 = vld [vmem:[%s1 + $0x1d8] sm:$0xff]
        %v273 = vld [vmem:[%s1 + $0x1e0] sm:$0xff]
        %v274 = vld [vmem:[%s1 + $0x1e8] sm:$0xff]
        %v275 = vld [vmem:[%s1 + $0x1f0] sm:$0xff]
        %v276 = vld [vmem:[%s1 + $0x1f8] sm:$0xff]
        %v277 = vpack.c.bf16 %v215, %v213
        %v278 = vpack.c.bf16 %v216, %v214
        %v279 = vpack.c.bf16 %v219, %v217
        %v280 = vpack.c.bf16 %v220, %v218
        %v281 = vpack.c.bf16 %v223, %v221
        %v282 = vpack.c.bf16 %v224, %v222
        %v283 = vpack.c.bf16 %v227, %v225
        %v284 = vpack.c.bf16 %v228, %v226
        %v285 = vpack.c.bf16 %v231, %v229
        %v286 = vpack.c.bf16 %v232, %v230
        %v287 = vpack.c.bf16 %v235, %v233
        %v288 = vpack.c.bf16 %v236, %v234
        %v289 = vpack.c.bf16 %v239, %v237
        %v290 = vpack.c.bf16 %v240, %v238
        %v291 = vpack.c.bf16 %v243, %v241
        %v292 = vpack.c.bf16 %v244, %v242
        %v293 = vpack.c.bf16 %v247, %v245
        %v294 = vpack.c.bf16 %v248, %v246
        %v295 = vpack.c.bf16 %v251, %v249
        %v296 = vpack.c.bf16 %v252, %v250
        %v297 = vpack.c.bf16 %v255, %v253
        %v298 = vpack.c.bf16 %v256, %v254
        %v299 = vpack.c.bf16 %v259, %v257
        %v300 = vpack.c.bf16 %v260, %v258
        %v301 = vpack.c.bf16 %v263, %v261
        %v302 = vpack.c.bf16 %v264, %v262
        %v303 = vpack.c.bf16 %v267, %v265
        %v304 = vpack.c.bf16 %v268, %v266
        %v305 = vpack.c.bf16 %v271, %v269
        %v306 = vpack.c.bf16 %v272, %v270
        %v307 = vpack.c.bf16 %v275, %v273
        %v308 = vpack.c.bf16 %v276, %v274
        %309 = vmatprep.subr.bf16.mxu0 %v278
        %310 = vmatpush1.bf16.msra.mxu0 %v277
        %311 = vmatprep.subr.bf16.mxu0 %v280
        %312 = vmatpush1.bf16.msra.mxu0 %v279
        %313 = vmatprep.subr.bf16.mxu0 %v282
        %314 = vmatpush1.bf16.msra.mxu0 %v281
        %315 = vmatprep.subr.bf16.mxu0 %v284
        %316 = vmatpush1.bf16.msra.mxu0 %v283
        %317 = vmatprep.subr.bf16.mxu0 %v286
        %318 = vmatpush1.bf16.msra.mxu0 %v285
        %319 = vmatprep.subr.bf16.mxu0 %v288
        %320 = vmatpush1.bf16.msra.mxu0 %v287
        %321 = vmatprep.subr.bf16.mxu0 %v290
        %322 = vmatpush1.bf16.msra.mxu0 %v289
        %323 = vmatprep.subr.bf16.mxu0 %v292
        %324 = vmatpush1.bf16.msra.mxu0 %v291
        %325 = vmatprep.subr.bf16.mxu0 %v294
        %326 = vmatpush1.bf16.msra.mxu0 %v293
        %327 = vmatprep.subr.bf16.mxu0 %v296
        %328 = vmatpush1.bf16.msra.mxu0 %v295
        %329 = vmatprep.subr.bf16.mxu0 %v298
        %330 = vmatpush1.bf16.msra.mxu0 %v297
        %331 = vmatprep.subr.bf16.mxu0 %v300
        %332 = vmatpush1.bf16.msra.mxu0 %v299
        %333 = vmatprep.subr.bf16.mxu0 %v302
        %334 = vmatpush1.bf16.msra.mxu0 %v301
        %335 = vmatprep.subr.bf16.mxu0 %v304
        %336 = vmatpush1.bf16.msra.mxu0 %v303
        %337 = vmatprep.subr.bf16.mxu0 %v306
        %338 = vmatpush1.bf16.msra.mxu0 %v305
        %339 = vmatprep.subr.bf16.mxu0 %v308
        %340 = vmatpush1.bf16.msra.mxu0 %v307
        %341 = vmatprep.mubr.bf16.mxu0 %v198
        %342 = vmatmul.mubr.bf16.gmra.mrb[0].mxu0 %v197
        %v343 = vpop.f32.mrb[0].mxu0
        %v344 = vadd.f32 0.0, %v343
        %v345 = vpop.f32.mrb[0].mxu0
        %v346 = vadd.f32 0.0, %v345
        %v347 = vpop.f32.mrb[0].mxu0
        %v348 = vadd.f32 0.0, %v347
        %v349 = vpop.f32.mrb[0].mxu0
        %v350 = vadd.f32 0.0, %v349
        %351 = vmatprep.mubr.bf16.mxu0 %v200
        %352 = vmatmul.mubr.bf16.gmra.mrb[0].mxu0 %v199
        %v353 = vpop.f32.mrb[0].mxu0
        %v354 = vadd.f32 0.0, %v353
        %v355 = vpop.f32.mrb[0].mxu0
        %v356 = vadd.f32 0.0, %v355
        %v357 = vpop.f32.mrb[0].mxu0
        %v358 = vadd.f32 0.0, %v357
        %v359 = vpop.f32.mrb[0].mxu0
        %v360 = vadd.f32 0.0, %v359
        %361 = vmatprep.mubr.bf16.mxu0 %v202
        %362 = vmatmul.mubr.bf16.gmra.mrb[0].mxu0 %v201
        %v363 = vpop.f32.mrb[0].mxu0
        %v364 = vadd.f32 0.0, %v363
        %v365 = vpop.f32.mrb[0].mxu0
        %v366 = vadd.f32 0.0, %v365
        %v367 = vpop.f32.mrb[0].mxu0
        %v368 = vadd.f32 0.0, %v367
        %v369 = vpop.f32.mrb[0].mxu0
        %v370 = vadd.f32 0.0, %v369
        %371 = vmatprep.mubr.bf16.mxu0 %v204
        %372 = vmatmul.mubr.bf16.gmra.mrb[0].mxu0 %v203
        %v373 = vpop.f32.mrb[0].mxu0
        %v374 = vadd.f32 0.0, %v373
        %v375 = vpop.f32.mrb[0].mxu0
        %v376 = vadd.f32 0.0, %v375
        %v377 = vpop.f32.mrb[0].mxu0
        %v378 = vadd.f32 0.0, %v377
        %v379 = vpop.f32.mrb[0].mxu0
        %v380 = vadd.f32 0.0, %v379
        %381 = vmatprep.mubr.bf16.mxu0 %v206
        %382 = vmatmul.mubr.bf16.gmra.mrb[0].mxu0 %v205
        %v383 = vpop.f32.mrb[0].mxu0
        %v384 = vadd.f32 0.0, %v383
        %v385 = vpop.f32.mrb[0].mxu0
        %v386 = vadd.f32 0.0, %v385
        %v387 = vpop.f32.mrb[0].mxu0
        %v388 = vadd.f32 0.0, %v387
        %v389 = vpop.f32.mrb[0].mxu0
        %v390 = vadd.f32 0.0, %v389
        %391 = vmatprep.mubr.bf16.mxu0 %v208
        %392 = vmatmul.mubr.bf16.gmra.mrb[0].mxu0 %v207
        %v393 = vpop.f32.mrb[0].mxu0
        %v394 = vadd.f32 0.0, %v393
        %v395 = vpop.f32.mrb[0].mxu0
        %v396 = vadd.f32 0.0, %v395
        %v397 = vpop.f32.mrb[0].mxu0
        %v398 = vadd.f32 0.0, %v397
        %v399 = vpop.f32.mrb[0].mxu0
        %v400 = vadd.f32 0.0, %v399
        %401 = vmatprep.mubr.bf16.mxu0 %v210
        %402 = vmatmul.mubr.bf16.gmra.mrb[0].mxu0 %v209
        %v403 = vpop.f32.mrb[0].mxu0
        %v404 = vadd.f32 0.0, %v403
        %v405 = vpop.f32.mrb[0].mxu0
        %v406 = vadd.f32 0.0, %v405
        %v407 = vpop.f32.mrb[0].mxu0
        %v408 = vadd.f32 0.0, %v407
        %v409 = vpop.f32.mrb[0].mxu0
        %v410 = vadd.f32 0.0, %v409
        %411 = vmatprep.mubr.bf16.mxu0 %v212
        %412 = vmatmul.mubr.bf16.gmra.mrb[0].mxu0 %v211
        %v413 = vpop.f32.mrb[0].mxu0
        %v414 = vadd.f32 0.0, %v413
        %v415 = vpop.f32.mrb[0].mxu0
        %v416 = vadd.f32 0.0, %v415
        %v417 = vpop.f32.mrb[0].mxu0
        %v418 = vadd.f32 0.0, %v417
        %v419 = vpop.f32.mrb[0].mxu0
        %v420 = vadd.f32 0.0, %v419
        %421 = vdwg.mxu0
        %v422 = vmul.f32 %v344, 0.0625
        %v423 = vmul.f32 %v348, 0.0625
        %v424 = vmul.f32 %v354, 0.0625
        %v425 = vmul.f32 %v358, 0.0625
        %v426 = vmul.f32 %v364, 0.0625
        %v427 = vmul.f32 %v368, 0.0625
        %v428 = vmul.f32 %v374, 0.0625
        %v429 = vmul.f32 %v378, 0.0625
        %v430 = vmul.f32 %v384, 0.0625
        %v431 = vmul.f32 %v388, 0.0625
        %v432 = vmul.f32 %v394, 0.0625
        %v433 = vmul.f32 %v398, 0.0625
        %v434 = vmul.f32 %v404, 0.0625
        %v435 = vmul.f32 %v408, 0.0625
        %v436 = vmul.f32 %v414, 0.0625
        %v437 = vmul.f32 %v418, 0.0625
        %v438 = vpack.c.bf16 %v423, %v422
        %v439 = vpack.c.bf16 %v425, %v424
        %v440 = vpack.c.bf16 %v427, %v426
        %v441 = vpack.c.bf16 %v429, %v428
        %v442 = vpack.c.bf16 %v431, %v430
        %v443 = vpack.c.bf16 %v433, %v432
        %v444 = vpack.c.bf16 %v435, %v434
        %v445 = vpack.c.bf16 %v437, %v436
        %v446 = vpack.c.bf16 %v348, %v344
        %v447 = vpack.c.bf16 %v358, %v354
        %v448 = vpack.c.bf16 %v368, %v364
        %v449 = vpack.c.bf16 %v378, %v374
        %v450 = vpack.c.bf16 %v388, %v384
        %v451 = vpack.c.bf16 %v398, %v394
        %v452 = vpack.c.bf16 %v408, %v404
        %v453 = vpack.c.bf16 %v418, %v414
        %v454 = vpack.c.bf16 %v350, %v346
        %v455 = vpack.c.bf16 %v360, %v356
        %v456 = vpack.c.bf16 %v370, %v366
        %v457 = vpack.c.bf16 %v380, %v376
        %v458 = vpack.c.bf16 %v390, %v386
        %v459 = vpack.c.bf16 %v400, %v396
        %v460 = vpack.c.bf16 %v410, %v406
        %v461 = vpack.c.bf16 %v420, %v416
        %470 = vrot.lane.b32.xlu0 %v446, 64
        %v471 = vpop.permute.xlu0 %470
        %472 = vrot.lane.b32.xlu0 %v447, 64
        %v473 = vpop.permute.xlu0 %472
        %474 = vrot.lane.b32.xlu0 %v448, 64
        %v475 = vpop.permute.xlu0 %474
        %476 = vrot.lane.b32.xlu0 %v449, 64
        %v477 = vpop.permute.xlu0 %476
        %478 = vrot.lane.b32.xlu0 %v450, 64
        %v479 = vpop.permute.xlu0 %478
        %480 = vrot.lane.b32.xlu0 %v451, 64
        %v481 = vpop.permute.xlu0 %480
        %482 = vrot.lane.b32.xlu0 %v452, 64
        %v483 = vpop.permute.xlu0 %482
        %484 = vrot.lane.b32.xlu0 %v453, 64
        %v485 = vpop.permute.xlu0 %484
        %vm486 = vcmask 523264
        %v488 = vsel %vm486, %v438, 0
        %v491 = vsel %vm486, %v439, 0
        %v494 = vsel %vm486, %v440, 0
        %v497 = vsel %vm486, %v441, 0
        %v500 = vsel %vm486, %v442, 0
        %v503 = vsel %vm486, %v443, 0
        %v506 = vsel %vm486, %v444, 0
        %v509 = vsel %vm486, %v445, 0
        %v512 = vsel %vm486, %v471, 0
        %v515 = vsel %vm486, %v473, 0
        %v518 = vsel %vm486, %v475, 0
        %v521 = vsel %vm486, %v477, 0
        %v524 = vsel %vm486, %v479, 0
        %v527 = vsel %vm486, %v481, 0
        %v530 = vsel %vm486, %v483, 0
        %v533 = vsel %vm486, %v485, 0
        %535 = vmatprep.subr.bf16.mxu0 0
        %536 = vmatpush1.bf16.xpose.msra.mxu0 %v512
        %537 = vmatprep.subr.bf16.mxu0 0
        %538 = vmatpush1.bf16.xpose.msra.mxu0 %v515
        %539 = vmatprep.subr.bf16.mxu0 0
        %540 = vmatpush1.bf16.xpose.msra.mxu0 %v518
        %541 = vmatprep.subr.bf16.mxu0 0
        %542 = vmatpush1.bf16.xpose.msra.mxu0 %v521
        %543 = vmatprep.subr.bf16.mxu0 0
        %544 = vmatpush1.bf16.xpose.msra.mxu0 %v524
        %545 = vmatprep.subr.bf16.mxu0 0
        %546 = vmatpush1.bf16.xpose.msra.mxu0 %v527
        %547 = vmatprep.subr.bf16.mxu0 0
        %548 = vmatpush1.bf16.xpose.msra.mxu0 %v530
        %549 = vmatprep.subr.bf16.mxu0 0
        %550 = vmatpush1.bf16.xpose.msra.mxu0 %v533
        %551 = vmatprep.subr.bf16.mxu0 0
        %552 = vmatpush1.bf16.xpose.msra.mxu0 0
        %553 = vmatprep.subr.bf16.mxu0 0
        %554 = vmatpush1.bf16.xpose.msra.mxu0 0
        %555 = vmatprep.subr.bf16.mxu0 0
        %556 = vmatpush1.bf16.xpose.msra.mxu0 0
        %557 = vmatprep.subr.bf16.mxu0 0
        %558 = vmatpush1.bf16.xpose.msra.mxu0 0
        %559 = vmatprep.subr.bf16.mxu0 0
        %560 = vmatpush1.bf16.xpose.msra.mxu0 0
        %561 = vmatprep.subr.bf16.mxu0 0
        %562 = vmatpush1.bf16.xpose.msra.mxu0 0
        %563 = vmatprep.subr.bf16.mxu0 0
        %564 = vmatpush1.bf16.xpose.msra.mxu0 0
        %565 = vmatprep.subr.bf16.mxu0 0
        %566 = vmatpush1.bf16.xpose.msra.mxu0 0
        %567 = vmatprep.mubr.bf16.mxu0 0
        %568 = vmatmul.mubr.bf16.gmra.mrb[0].mxu0 %v488
        %v569 = vpop.f32.mrb[0].mxu0
        %v570 = vadd.f32 0.0, %v569
        %v571 = vpop.f32.mrb[0].mxu0
        %v572 = vpop.f32.mrb[0].mxu0
        %v573 = vadd.f32 0.0, %v572
        %v574 = vpop.f32.mrb[0].mxu0
        %575 = vmatprep.mubr.bf16.mxu0 0
        %576 = vmatmul.mubr.bf16.gmra.mrb[0].mxu0 %v491
        %v577 = vpop.f32.mrb[0].mxu0
        %v578 = vadd.f32 0.0, %v577
        %v579 = vpop.f32.mrb[0].mxu0
        %v580 = vpop.f32.mrb[0].mxu0
        %v581 = vadd.f32 0.0, %v580
        %v582 = vpop.f32.mrb[0].mxu0
        %583 = vmatprep.mubr.bf16.mxu0 0
        %584 = vmatmul.mubr.bf16.gmra.mrb[0].mxu0 %v494
        %v585 = vpop.f32.mrb[0].mxu0
        %v586 = vadd.f32 0.0, %v585
        %v587 = vpop.f32.mrb[0].mxu0
        %v588 = vpop.f32.mrb[0].mxu0
        %v589 = vadd.f32 0.0, %v588
        %v590 = vpop.f32.mrb[0].mxu0
        %591 = vmatprep.mubr.bf16.mxu0 0
        %592 = vmatmul.mubr.bf16.gmra.mrb[0].mxu0 %v497
        %v593 = vpop.f32.mrb[0].mxu0
        %v594 = vadd.f32 0.0, %v593
        %v595 = vpop.f32.mrb[0].mxu0
        %v596 = vpop.f32.mrb[0].mxu0
        %v597 = vadd.f32 0.0, %v596
        %v598 = vpop.f32.mrb[0].mxu0
        %599 = vmatprep.mubr.bf16.mxu0 0
        %600 = vmatmul.mubr.bf16.gmra.mrb[0].mxu0 %v500
        %v601 = vpop.f32.mrb[0].mxu0
        %v602 = vadd.f32 0.0, %v601
        %v603 = vpop.f32.mrb[0].mxu0
        %v604 = vpop.f32.mrb[0].mxu0
        %v605 = vadd.f32 0.0, %v604
        %v606 = vpop.f32.mrb[0].mxu0
        %607 = vmatprep.mubr.bf16.mxu0 0
        %608 = vmatmul.mubr.bf16.gmra.mrb[0].mxu0 %v503
        %v609 = vpop.f32.mrb[0].mxu0
        %v610 = vadd.f32 0.0, %v609
        %v611 = vpop.f32.mrb[0].mxu0
        %v612 = vpop.f32.mrb[0].mxu0
        %v613 = vadd.f32 0.0, %v612
        %v614 = vpop.f32.mrb[0].mxu0
        %615 = vmatprep.mubr.bf16.mxu0 0
        %616 = vmatmul.mubr.bf16.gmra.mrb[0].mxu0 %v506
        %v617 = vpop.f32.mrb[0].mxu0
        %v618 = vadd.f32 0.0, %v617
        %v619 = vpop.f32.mrb[0].mxu0
        %v620 = vpop.f32.mrb[0].mxu0
        %v621 = vadd.f32 0.0, %v620
        %v622 = vpop.f32.mrb[0].mxu0
        %623 = vmatprep.mubr.bf16.mxu0 0
        %624 = vmatmul.mubr.bf16.gmra.mrb[0].mxu0 %v509
        %v625 = vpop.f32.mrb[0].mxu0
        %v626 = vadd.f32 0.0, %v625
        %v627 = vpop.f32.mrb[0].mxu0
        %v628 = vpop.f32.mrb[0].mxu0
        %v629 = vadd.f32 0.0, %v628
        %v630 = vpop.f32.mrb[0].mxu0
        %631 = vdwg.mxu0
        %v632 = vlaneseq
        %v633 = vshrl.u32 %v632, 7
        %v634 = vadd.s32 %v633, 8
        %v635 = vadd.s32 %v633, 16
        %v636 = vadd.s32 %v633, 24
        %v637 = vadd.s32 %v633, 32
        %v638 = vadd.s32 %v633, 40
        %v639 = vadd.s32 %v633, 48
        %v640 = vadd.s32 %v633, 56
        %v641 = vadd.s32 %v633, 64
        %v642 = vadd.s32 %v633, 72
        %v643 = vadd.s32 %v633, 80
        %v644 = vadd.s32 %v633, 88
        %v645 = vadd.s32 %v633, 96
        %v646 = vadd.s32 %v633, 104
        %v647 = vadd.s32 %v633, 112
        %v648 = vadd.s32 %v633, 120
        %v649 = vlaneseq
        %v650 = vand.u32 %v649, 127
        %vm651 = vcmp.le.s32.totalorder %v650, %v633
        %vm652 = vcmp.le.s32.totalorder %v650, %v634
        %vm653 = vcmp.le.s32.totalorder %v650, %v635
        %vm654 = vcmp.le.s32.totalorder %v650, %v636
        %vm655 = vcmp.le.s32.totalorder %v650, %v637
        %vm656 = vcmp.le.s32.totalorder %v650, %v638
        %vm657 = vcmp.le.s32.totalorder %v650, %v639
        %vm658 = vcmp.le.s32.totalorder %v650, %v640
        %vm659 = vcmp.le.s32.totalorder %v650, %v641
        %vm660 = vcmp.le.s32.totalorder %v650, %v642
        %vm661 = vcmp.le.s32.totalorder %v650, %v643
        %vm662 = vcmp.le.s32.totalorder %v650, %v644
        %vm663 = vcmp.le.s32.totalorder %v650, %v645
        %vm664 = vcmp.le.s32.totalorder %v650, %v646
        %vm665 = vcmp.le.s32.totalorder %v650, %v647
        %vm666 = vcmp.le.s32.totalorder %v650, %v648
        %v667 = vsel %vm651, %v570, -inf
        %v668 = vsel %vm652, %v573, -inf
        %v669 = vsel %vm653, %v578, -inf
        %v670 = vsel %vm654, %v581, -inf
        %v671 = vsel %vm655, %v586, -inf
        %v672 = vsel %vm656, %v589, -inf
        %v673 = vsel %vm657, %v594, -inf
        %v674 = vsel %vm658, %v597, -inf
        %v675 = vsel %vm659, %v602, -inf
        %v676 = vsel %vm660, %v605, -inf
        %v677 = vsel %vm661, %v610, -inf
        %v678 = vsel %vm662, %v613, -inf
        %v679 = vsel %vm663, %v618, -inf
        %v680 = vsel %vm664, %v621, -inf
        %v681 = vsel %vm665, %v626, -inf
        %v682 = vsel %vm666, %v629, -inf
        %683 = vmax.xlane.f32.xlu0 %v667
        %v684 = vpop.xlane.xlu0 %683
        %685 = vmax.xlane.f32.xlu0 %v668
        %v686 = vpop.xlane.xlu0 %685
        %687 = vmax.xlane.f32.xlu0 %v669
        %v688 = vpop.xlane.xlu0 %687
        %689 = vmax.xlane.f32.xlu0 %v670
        %v690 = vpop.xlane.xlu0 %689
        %691 = vmax.xlane.f32.xlu0 %v671
        %v692 = vpop.xlane.xlu0 %691
        %693 = vmax.xlane.f32.xlu0 %v672
        %v694 = vpop.xlane.xlu0 %693
        %695 = vmax.xlane.f32.xlu0 %v673
        %v696 = vpop.xlane.xlu0 %695
        %697 = vmax.xlane.f32.xlu0 %v674
        %v698 = vpop.xlane.xlu0 %697
        %699 = vmax.xlane.f32.xlu0 %v675
        %v700 = vpop.xlane.xlu0 %699
        %701 = vmax.xlane.f32.xlu0 %v676
        %v702 = vpop.xlane.xlu0 %701
        %703 = vmax.xlane.f32.xlu0 %v677
        %v704 = vpop.xlane.xlu0 %703
        %705 = vmax.xlane.f32.xlu0 %v678
        %v706 = vpop.xlane.xlu0 %705
        %707 = vmax.xlane.f32.xlu0 %v679
        %v708 = vpop.xlane.xlu0 %707
        %709 = vmax.xlane.f32.xlu0 %v680
        %v710 = vpop.xlane.xlu0 %709
        %711 = vmax.xlane.f32.xlu0 %v681
        %v712 = vpop.xlane.xlu0 %711
        %713 = vmax.xlane.f32.xlu0 %v682
        %v714 = vpop.xlane.xlu0 %713
        %v715 = vsub.f32 %v667, %v684
        %v716 = vsub.f32 %v668, %v686
        %v717 = vsub.f32 %v669, %v688
        %v718 = vsub.f32 %v670, %v690
        %v719 = vsub.f32 %v671, %v692
        %v720 = vsub.f32 %v672, %v694
        %v721 = vsub.f32 %v673, %v696
        %v722 = vsub.f32 %v674, %v698
        %v723 = vsub.f32 %v675, %v700
        %v724 = vsub.f32 %v676, %v702
        %v725 = vsub.f32 %v677, %v704
        %v726 = vsub.f32 %v678, %v706
        %v727 = vsub.f32 %v679, %v708
        %v728 = vsub.f32 %v680, %v710
        %v729 = vsub.f32 %v681, %v712
        %v730 = vsub.f32 %v682, %v714
        %v731 = vmul.f32 %v715, 1.442695
        %v732 = vpow.pop %v731
        %v733 = vmul.f32 %v716, 1.442695
        %v734 = vpow.pop %v733
        %v735 = vmul.f32 %v717, 1.442695
        %v736 = vpow.pop %v735
        %v737 = vmul.f32 %v718, 1.442695
        %v738 = vpow.pop %v737
        %v739 = vmul.f32 %v719, 1.442695
        %v740 = vpow.pop %v739
        %v741 = vmul.f32 %v720, 1.442695
        %v742 = vpow.pop %v741
        %v743 = vmul.f32 %v721, 1.442695
        %v744 = vpow.pop %v743
        %v745 = vmul.f32 %v722, 1.442695
        %v746 = vpow.pop %v745
        %v747 = vmul.f32 %v723, 1.442695
        %v748 = vpow.pop %v747
        %v749 = vmul.f32 %v724, 1.442695
        %v750 = vpow.pop %v749
        %v751 = vmul.f32 %v725, 1.442695
        %v752 = vpow.pop %v751
        %v753 = vmul.f32 %v726, 1.442695
        %v754 = vpow.pop %v753
        %v755 = vmul.f32 %v727, 1.442695
        %v756 = vpow.pop %v755
        %v757 = vmul.f32 %v728, 1.442695
        %v758 = vpow.pop %v757
        %v759 = vmul.f32 %v729, 1.442695
        %v760 = vpow.pop %v759
        %v761 = vmul.f32 %v730, 1.442695
        %v762 = vpow.pop %v761
        %763 = vadd.xlane.f32.xlu0 %v732
        %v764 = vpop.xlane.xlu0 %763
        %765 = vadd.xlane.f32.xlu0 %v734
        %v766 = vpop.xlane.xlu0 %765
        %767 = vadd.xlane.f32.xlu0 %v736
        %v768 = vpop.xlane.xlu0 %767
        %769 = vadd.xlane.f32.xlu0 %v738
        %v770 = vpop.xlane.xlu0 %769
        %771 = vadd.xlane.f32.xlu0 %v740
        %v772 = vpop.xlane.xlu0 %771
        %773 = vadd.xlane.f32.xlu0 %v742
        %v774 = vpop.xlane.xlu0 %773
        %775 = vadd.xlane.f32.xlu0 %v744
        %v776 = vpop.xlane.xlu0 %775
        %777 = vadd.xlane.f32.xlu0 %v746
        %v778 = vpop.xlane.xlu0 %777
        %779 = vadd.xlane.f32.xlu0 %v748
        %v780 = vpop.xlane.xlu0 %779
        %781 = vadd.xlane.f32.xlu0 %v750
        %v782 = vpop.xlane.xlu0 %781
        %783 = vadd.xlane.f32.xlu0 %v752
        %v784 = vpop.xlane.xlu0 %783
        %785 = vadd.xlane.f32.xlu0 %v754
        %v786 = vpop.xlane.xlu0 %785
        %787 = vadd.xlane.f32.xlu0 %v756
        %v788 = vpop.xlane.xlu0 %787
        %789 = vadd.xlane.f32.xlu0 %v758
        %v790 = vpop.xlane.xlu0 %789
        %791 = vadd.xlane.f32.xlu0 %v760
        %v792 = vpop.xlane.xlu0 %791
        %793 = vadd.xlane.f32.xlu0 %v762
        %v794 = vpop.xlane.xlu0 %793
        %v795 = vpack.c.bf16 %v734, %v732
        %v796 = vpack.c.bf16 %v738, %v736
        %v797 = vpack.c.bf16 %v742, %v740
        %v798 = vpack.c.bf16 %v746, %v744
        %v799 = vpack.c.bf16 %v750, %v748
        %v800 = vpack.c.bf16 %v754, %v752
        %v801 = vpack.c.bf16 %v758, %v756
        %v802 = vpack.c.bf16 %v762, %v760
        %803 = vmatprep.subr.bf16.mxu0 0
        %804 = vmatpush1.bf16.msra.mxu0 %v454
        %805 = vmatprep.subr.bf16.mxu0 0
        %806 = vmatpush1.bf16.msra.mxu0 %v455
        %807 = vmatprep.subr.bf16.mxu0 0
        %808 = vmatpush1.bf16.msra.mxu0 %v456
        %809 = vmatprep.subr.bf16.mxu0 0
        %810 = vmatpush1.bf16.msra.mxu0 %v457
        %811 = vmatprep.subr.bf16.mxu0 0
        %812 = vmatpush1.bf16.msra.mxu0 %v458
        %813 = vmatprep.subr.bf16.mxu0 0
        %814 = vmatpush1.bf16.msra.mxu0 %v459
        %815 = vmatprep.subr.bf16.mxu0 0
        %816 = vmatpush1.bf16.msra.mxu0 %v460
        %817 = vmatprep.subr.bf16.mxu0 0
        %818 = vmatpush1.bf16.msra.mxu0 %v461
        %819 = vmatprep.subr.bf16.mxu0 0
        %820 = vmatpush1.bf16.msra.mxu0 0
        %821 = vmatprep.subr.bf16.mxu0 0
        %822 = vmatpush1.bf16.msra.mxu0 0
        %823 = vmatprep.subr.bf16.mxu0 0
        %824 = vmatpush1.bf16.msra.mxu0 0
        %825 = vmatprep.subr.bf16.mxu0 0
        %826 = vmatpush1.bf16.msra.mxu0 0
        %827 = vmatprep.subr.bf16.mxu0 0
        %828 = vmatpush1.bf16.msra.mxu0 0
        %829 = vmatprep.subr.bf16.mxu0 0
        %830 = vmatpush1.bf16.msra.mxu0 0
        %831 = vmatprep.subr.bf16.mxu0 0
        %832 = vmatpush1.bf16.msra.mxu0 0
        %833 = vmatprep.subr.bf16.mxu0 0
        %834 = vmatpush1.bf16.msra.mxu0 0
        %835 = vmatprep.mubr.bf16.mxu0 0
        %836 = vmatmul.mubr.bf16.gmra.mrb[0].mxu0 %v795
        %v837 = vpop.f32.mrb[0].mxu0
        %v838 = vadd.f32 0.0, %v837
        %v839 = vpop.f32.mrb[0].mxu0
        %v840 = vpop.f32.mrb[0].mxu0
        %v841 = vadd.f32 0.0, %v840
        %v842 = vpop.f32.mrb[0].mxu0
        %843 = vmatprep.mubr.bf16.mxu0 0
        %844 = vmatmul.mubr.bf16.gmra.mrb[0].mxu0 %v796
        %v845 = vpop.f32.mrb[0].mxu0
        %v846 = vadd.f32 0.0, %v845
        %v847 = vpop.f32.mrb[0].mxu0
        %v848 = vpop.f32.mrb[0].mxu0
        %v849 = vadd.f32 0.0, %v848
        %v850 = vpop.f32.mrb[0].mxu0
        %851 = vmatprep.mubr.bf16.mxu0 0
        %852 = vmatmul.mubr.bf16.gmra.mrb[0].mxu0 %v797
        %v853 = vpop.f32.mrb[0].mxu0
        %v854 = vadd.f32 0.0, %v853
        %v855 = vpop.f32.mrb[0].mxu0
        %v856 = vpop.f32.mrb[0].mxu0
        %v857 = vadd.f32 0.0, %v856
        %v858 = vpop.f32.mrb[0].mxu0
        %859 = vmatprep.mubr.bf16.mxu0 0
        %860 = vmatmul.mubr.bf16.gmra.mrb[0].mxu0 %v798
        %v861 = vpop.f32.mrb[0].mxu0
        %v862 = vadd.f32 0.0, %v861
        %v863 = vpop.f32.mrb[0].mxu0
        %v864 = vpop.f32.mrb[0].mxu0
        %v865 = vadd.f32 0.0, %v864
        %v866 = vpop.f32.mrb[0].mxu0
        %867 = vmatprep.mubr.bf16.mxu0 0
        %868 = vmatmul.mubr.bf16.gmra.mrb[0].mxu0 %v799
        %v869 = vpop.f32.mrb[0].mxu0
        %v870 = vadd.f32 0.0, %v869
        %v871 = vpop.f32.mrb[0].mxu0
        %v872 = vpop.f32.mrb[0].mxu0
        %v873 = vadd.f32 0.0, %v872
        %v874 = vpop.f32.mrb[0].mxu0
        %875 = vmatprep.mubr.bf16.mxu0 0
        %876 = vmatmul.mubr.bf16.gmra.mrb[0].mxu0 %v800
        %v877 = vpop.f32.mrb[0].mxu0
        %v878 = vadd.f32 0.0, %v877
        %v879 = vpop.f32.mrb[0].mxu0
        %v880 = vpop.f32.mrb[0].mxu0
        %v881 = vadd.f32 0.0, %v880
        %v882 = vpop.f32.mrb[0].mxu0
        %883 = vmatprep.mubr.bf16.mxu0 0
        %884 = vmatmul.mubr.bf16.gmra.mrb[0].mxu0 %v801
        %v885 = vpop.f32.mrb[0].mxu0
        %v886 = vadd.f32 0.0, %v885
        %v887 = vpop.f32.mrb[0].mxu0
        %v888 = vpop.f32.mrb[0].mxu0
        %v889 = vadd.f32 0.0, %v888
        %v890 = vpop.f32.mrb[0].mxu0
        %891 = vmatprep.mubr.bf16.mxu0 0
        %892 = vmatmul.mubr.bf16.gmra.mrb[0].mxu0 %v802
        %v893 = vpop.f32.mrb[0].mxu0
        %v894 = vadd.f32 0.0, %v893
        %v895 = vpop.f32.mrb[0].mxu0
        %v896 = vpop.f32.mrb[0].mxu0
        %v897 = vadd.f32 0.0, %v896
        %v898 = vpop.f32.mrb[0].mxu0
        %899 = vdwg.mxu0
        %v900 = vrcp.pop %v764
        %v901 = vrcp.pop %v766
        %v902 = vrcp.pop %v768
        %v903 = vrcp.pop %v770
        %v904 = vrcp.pop %v772
        %v905 = vrcp.pop %v774
        %v906 = vrcp.pop %v776
        %v907 = vrcp.pop %v778
        %v908 = vrcp.pop %v780
        %v909 = vrcp.pop %v782
        %v910 = vrcp.pop %v784
        %v911 = vrcp.pop %v786
        %v912 = vrcp.pop %v788
        %v913 = vrcp.pop %v790
        %v914 = vrcp.pop %v792
        %v915 = vrcp.pop %v794
        %v916 = vmul.f32 %v838, %v900
        %v917 = vmul.f32 %v841, %v901
        %v918 = vmul.f32 %v846, %v902
        %v919 = vmul.f32 %v849, %v903
        %v920 = vmul.f32 %v854, %v904
        %v921 = vmul.f32 %v857, %v905
        %v922 = vmul.f32 %v862, %v906
        %v923 = vmul.f32 %v865, %v907
        %v924 = vmul.f32 %v870, %v908
        %v925 = vmul.f32 %v873, %v909
        %v926 = vmul.f32 %v878, %v910
        %v927 = vmul.f32 %v881, %v911
        %v928 = vmul.f32 %v886, %v912
        %v929 = vmul.f32 %v889, %v913
        %v930 = vmul.f32 %v894, %v914
        %v931 = vmul.f32 %v897, %v915
        %932 = vst.msk [vmem:[%s163] sm:$0xff] %vm486, %v916
        %933 = vst.msk [vmem:[%s163 + $0x8] sm:$0xff] %vm486, %v917
        %934 = vst.msk [vmem:[%s163 + $0x10] sm:$0xff] %vm486, %v918
        %935 = vst.msk [vmem:[%s163 + $0x18] sm:$0xff] %vm486, %v919
        %936 = vst.msk [vmem:[%s163 + $0x20] sm:$0xff] %vm486, %v920
        %937 = vst.msk [vmem:[%s163 + $0x28] sm:$0xff] %vm486, %v921
        %938 = vst.msk [vmem:[%s163 + $0x30] sm:$0xff] %vm486, %v922
        %939 = vst.msk [vmem:[%s163 + $0x38] sm:$0xff] %vm486, %v923
        %940 = vst.msk [vmem:[%s163 + $0x40] sm:$0xff] %vm486, %v924
        %941 = vst.msk [vmem:[%s163 + $0x48] sm:$0xff] %vm486, %v925
        %942 = vst.msk [vmem:[%s163 + $0x50] sm:$0xff] %vm486, %v926
        %943 = vst.msk [vmem:[%s163 + $0x58] sm:$0xff] %vm486, %v927
        %944 = vst.msk [vmem:[%s163 + $0x60] sm:$0xff] %vm486, %v928
        %945 = vst.msk [vmem:[%s163 + $0x68] sm:$0xff] %vm486, %v929
        %946 = vst.msk [vmem:[%s163 + $0x70] sm:$0xff] %vm486, %v930
        %947 = vst.msk [vmem:[%s163 + $0x78] sm:$0xff] %vm486, %v931
        %p948 = scmp.lt.s32.totalorder %s16, 3
        %s949 = scalar_select %p948, %s16, 3
        %s950 = smul.addr %s949, 16
        %s951 = smul.addr %s950, 8
        %s952 = scalar_lea.vmem %s2, %s951
        // Predicated region
        $region33: #{tpu_custom_call.1} parent=27 // pred_check
          %p953 = pneg %p81
        $region34: #{tpu_custom_call.1} parent=27 // pred_check_branch
          %955 = sbr.rel (%p953) target = $region36
        $region35: #{tpu_custom_call.1} parent=27 // pred_region
          _
        $region36: #{tpu_custom_call.1} parent=27 // pred_fallthru
          _
      $region28: #{tpu_custom_call.1} parent=5 // pred_fallthru
        _
      %p956 = scmp.le.s32.totalorder 2, %s11
      // Predicated region
      $region37: #{tpu_custom_call.1} parent=5 // pred_check
        %p957 = pneg %p956
      $region38: #{tpu_custom_call.1} parent=5 // pred_check_branch
        %959 = sbr.rel (%p957) target = $region40
      $region39: #{tpu_custom_call.1} parent=5 // pred_region
        %s960 = ssub.s32 %s11, 2
        // Predicated region
        $region41: #{tpu_custom_call.1} parent=39 // pred_check
          %p961 = pneg %p87
        $region42: #{tpu_custom_call.1} parent=39 // pred_check_branch
          %963 = sbr.rel (%p961) target = $region44
        $region43: #{tpu_custom_call.1} parent=39 // pred_region
          %p964 = scmp.lt.s32.totalorder %s17, 3
          %s965 = scalar_select %p964, %s17, 3
          %s966 = smul.addr %s965, 16
          %s967 = smul.addr %s966, 8
          %s968 = scalar_lea.vmem %s2, %s967
        $region44: #{tpu_custom_call.1} parent=39 // pred_fallthru
          _
      $region40: #{tpu_custom_call.1} parent=5 // pred_fallthru
        _
    $region6: #{tpu_custom_call.1} parent=1 // loop_footer
      %s15 = sadd.s32 1, %s11
    $region7: #{tpu_custom_call.1} parent=1 // loop_footer_branch
      %10 = sbr.rel target = $region3
    $region8: #{tpu_custom_call.1} parent=1 // loop_exit
      _
    %969 = vsyncpa [#allocation3], 1
    %s970 = scalar_lea.sflag [#allocation3], 1
    %971 = vsyncpa %s970, 1

</llo_original>
